<compile_context>
chip_gen: v7x
topology: tpu7x:2x2x1
jax: 0.10.0
libtpu: 0.0.40
codegen_flags: <defaults>
</compile_context>

<pallas_src>
import functools

import numpy as np

import jax
import jax.numpy as jnp
from jax.experimental import pallas as pl
from jax.experimental.pallas import tpu as pltpu


def _round_up(x, m):
    return (x + m - 1) // m * m


def _pad_axis(a, axis, new_size):
    pad = new_size - a.shape[axis]
    if pad == 0:
        return a
    widths = [(0, 0)] * a.ndim
    widths[axis] = (0, pad)
    return jnp.pad(a, widths)


def _sublane_multiple(dtype):
    bits = np.dtype(dtype).itemsize * 8
    return max(8, 256 // bits)  # 8 (f32), 16 (bf16), 32 (int8/fp8)


def _vmem_budget_bytes():
    cap = 64 * 1024 * 1024  # conservative fallback == v7x per-core VMEM
    try:
        cap = int(getattr(pltpu.get_tpu_info(), "vmem_capacity_bytes", cap))
    except Exception:
        pass
    # Leave ~25% headroom for Mosaic internal scratch:
    #   128 MiB (v5e/v6e) -> 96 MiB budget, 64 MiB (v7x) -> 48 MiB budget.
    return max(32 * 1024 * 1024, (cap * 3) // 4)


def _expert_kernel(x_ref, w1_ref, b1_ref, w2_ref, b2_ref, o_ref, *scratch,
                   approximate_gelu=False):
    """One (M-tile, N-tile, hidden-tile) step of fc1 -> GELU -> dropout(id) -> fc2."""
    # float32 output: accumulate directly into the VMEM-resident output block
    # (its block index is constant along the hidden/reduction axis).
    acc_ref = scratch[0] if scratch else o_ref
    j = pl.program_id(2)

    # Fold the fc2 bias into the accumulator init (no epilogue bias add).
    @pl.when(j == 0)
    def _():
        acc_ref[...] = jnp.broadcast_to(
            b2_ref[...].astype(jnp.float32), acc_ref.shape)

    # fc1 on this hidden tile: [bm, in] @ [in, th] + [1, th]
    h = jnp.dot(x_ref[...], w1_ref[...],
                preferred_element_type=jnp.float32) + b1_ref[...]

    if approximate_gelu:
        # tanh GELU -> EUP (separate VLIW slot; effectively free next to the MXU).
        c = jnp.float32(0.7978845608028654)  # sqrt(2/pi)
        h = 0.5 * h * (1.0 + jnp.tanh(c * (h + 0.044715 * (h * h * h))))
    else:
        # Exact (erf) GELU matches torch.nn.GELU() default numerics.
        h = 0.5 * h * (1.0 + jax.lax.erf(h * jnp.float32(0.7071067811865476)))

    # nn.Dropout is identity in eval mode; reproduced as identity.
    # TODO(synk): training-mode stochastic dropout (pltpu.prng_*) not emitted.

    # Partial fc2 for this hidden tile, accumulated in f32.
    acc_ref[...] += jnp.dot(h.astype(w2_ref.dtype), w2_ref[...],
                            preferred_element_type=jnp.float32)

    if scratch:  # low-precision output: cast + store once on the last hidden tile
        @pl.when(j == pl.num_programs(2) - 1)
        def _():
            o_ref[...] = acc_ref[...].astype(o_ref.dtype)


def make_expert_layer(w1, b1, w2, b2, *, block_m=512, approximate_gelu=False):
    """Build the fused expert forward: x[B, input] -> [B, output].

    Weights are padded once here (setup time).  Returns a callable `f(x)`.
    """
    w1 = jnp.asarray(w1)
    w2 = jnp.asarray(w2)
    b1 = jnp.asarray(b1).reshape(1, -1)
    b2 = jnp.asarray(b2).reshape(1, -1)

    in_dim, hid = w1.shape
    out_dim = w2.shape[1]

    # Lane-dense / MXU-friendly padded sizes.
    in_p = _round_up(in_dim, 128)
    out_p = _round_up(out_dim, 128)
    hid_128 = _round_up(hid, 128)

    sub = _sublane_multiple(w1.dtype)
    budget = _vmem_budget_bytes()
    w_bytes = np.dtype(w1.dtype).itemsize
    x_bytes = w_bytes  # assume activations match weight dtype for sizing

    def _footprint(bm, th):
        weights = 2 * (in_p * th + th * out_p + th + out_p) * w_bytes  # 2x-buffered slabs
        io = 2 * bm * in_p * x_bytes + 2 * bm * out_p * x_bytes        # 2x-buffered x / out tiles
        acc = bm * out_p * 4                                           # f32 accumulator
        inter = 2 * bm * th * 4                                        # fc1/GELU f32 intermediate
        return weights + io + acc + inter

    # M-tile candidates (largest first), multiples of the dtype sublane packing.
    bm_candidates = []
    bm_c = _round_up(block_m, sub)
    while bm_c >= sub:
        bm_candidates.append(bm_c)
        if bm_c == sub:
            break
        bm_c = max(sub, _round_up(bm_c // 2, sub))

    def _choose_tiles():
        # Phase 1: keep the FULL weights VMEM-resident.  Constant weight block
        # index => Pallas elides re-fetch, weight HBM traffic drops to 1x
        # regardless of how many M tiles there are.
        for bm in bm_candidates:
            if _footprint(bm, hid_128) <= budget:
                return bm, hid_128
        # Phase 2: stream the hidden dim with the largest tile that fits;
        # prefer a large M tile (it divides the weight re-read count).
        th_candidates = sorted({min(hid_128, t) for t in (1024, 512, 256, 128)},
                               reverse=True)
        for bm in bm_candidates:
            for th_c in th_candidates:
                if _footprint(bm, th_c) <= budget:
                    return bm, th_c
        return sub, 128

    bm_max, th = _choose_tiles()
    hid_p = _round_up(hid, th)

    # Pad parameters ONCE (static per expert); zero padding keeps the math exact.
    w1p = _pad_axis(_pad_axis(w1, 0, in_p), 1, hid_p)
    b1p = _pad_axis(b1, 1, hid_p)
    w2p = _pad_axis(_pad_axis(w2, 0, hid_p), 1, out_p)
    b2p = _pad_axis(b2, 1, out_p)

    kernel = functools.partial(_expert_kernel, approximate_gelu=approximate_gelu)

    @jax.jit
    def _fwd(x, w1p, b1p, w2p, b2p):
        if x.shape[1] != in_dim:
            raise ValueError(f"expected x[..., {in_dim}], got {x.shape}")
        B = x.shape[0]
        out_dtype = x.dtype

        bm = min(bm_max, _round_up(B, sub))
        b_p = _round_up(B, bm)
        m_tiles = b_p // bm
        j_tiles = hid_p // th

        # When the per-expert batch has a single M tile, split the output dim
        # into two parallel tiles so a second TensorCore (v7x) gets work.
        if m_tiles < 2 and out_p % 256 == 0:
            tn = out_p // 2
        else:
            tn = out_p
        n_tiles = out_p // tn

        # f32 output accumulates in-place in the resident output block; only
        # low-precision outputs need a separate f32 scratch accumulator.
        use_scratch = np.dtype(out_dtype) != np.dtype(jnp.float32)
        scratch_shapes = [pltpu.VMEM((bm, tn), jnp.float32)] if use_scratch else []

        # Per-call padding touches only the activation (batch + lane dims).
        xp = _pad_axis(_pad_axis(x, 0, b_p), 1, in_p)

        cost = pl.CostEstimate(
            flops=int(2 * b_p * (in_p * hid_p + hid_p * out_p)),
            transcendentals=int(b_p * hid_p),
            bytes_accessed=int(
                b_p * in_p * np.dtype(x.dtype).itemsize
                + (w1p.size + b1p.size + w2p.size + b2p.size) * w_bytes
                + b_p * out_p * np.dtype(out_dtype).itemsize),
        )

        out = pl.pallas_call(
            kernel,
            out_shape=jax.ShapeDtypeStruct((b_p, out_p), out_dtype),
            grid_spec=pltpu.PrefetchScalarGridSpec(
                num_scalar_prefetch=0,
                grid=(m_tiles, n_tiles, j_tiles),
                in_specs=[
                    pl.BlockSpec((bm, in_p), lambda i, n, j: (i, 0)),   # x M-tile
                    pl.BlockSpec((in_p, th), lambda i, n, j: (0, j)),   # w1 hidden slab
                    pl.BlockSpec((1, th), lambda i, n, j: (0, j)),      # b1 hidden slab
                    pl.BlockSpec((th, tn), lambda i, n, j: (j, n)),     # w2 slab
                    pl.BlockSpec((1, tn), lambda i, n, j: (0, n)),      # b2
                ],
                out_specs=pl.BlockSpec((bm, tn), lambda i, n, j: (i, n)),
                scratch_shapes=scratch_shapes,
            ),
            compiler_params=pltpu.CompilerParams(
                dimension_semantics=("parallel", "parallel", "arbitrary"),
                vmem_limit_bytes=budget),
            cost_estimate=cost,
        )(xp, w1p, b1p, w2p, b2p)

        return out[:B, :out_dim]

    def expert_layer(x):
        return _fwd(x, w1p, b1p, w2p, b2p)

    return expert_layer


def _reference(x, w1, b1, w2, b2):
    h = x @ w1 + b1.reshape(1, -1)
    h = jax.nn.gelu(h, approximate=False)
    return h @ w2 + b2.reshape(1, -1)


if __name__ == "__main__":
    input_size, hidden_size, output_size = 32, 64, 32
    batch = 16

    key = jax.random.PRNGKey(0)
    kx, k1, k2, k3, k4 = jax.random.split(key, 5)

    x = jax.random.normal(kx, (batch, input_size), dtype=jnp.float32)
    # nn.Linear parameters (deterministic synthetic), weights pre-transposed to [in, out].
    w1 = jax.random.normal(k1, (input_size, hidden_size), dtype=jnp.float32) * 0.05
    b1 = jax.random.normal(k2, (hidden_size,), dtype=jnp.float32) * 0.05
    w2 = jax.random.normal(k3, (hidden_size, output_size), dtype=jnp.float32) * 0.05
    b2 = jax.random.normal(k4, (output_size,), dtype=jnp.float32) * 0.05

    expert = make_expert_layer(w1, b1, w2, b2)
    out = jax.block_until_ready(expert(x))

    ref = _reference(x, w1, b1, w2, b2)
    assert out.shape == (batch, output_size)
    assert jnp.allclose(out, ref, atol=1e-5, rtol=1e-5), "mismatch vs reference"

    print("KERNEL_OK")
</pallas_src>

<mosaic_0001>
module attributes {stable_mosaic.version = 11 : i64} {
  func.func @_expert_kernel(%arg0: i32, %arg1: i32, %arg2: i32, %arg3: memref<16x128xf32, #tpu.memory_space<vmem>>, %arg4: memref<128x128xf32, #tpu.memory_space<vmem>>, %arg5: memref<1x128xf32, #tpu.memory_space<vmem>>, %arg6: memref<128x128xf32, #tpu.memory_space<vmem>>, %arg7: memref<1x128xf32, #tpu.memory_space<vmem>>, %arg8: memref<16x128xf32, #tpu.memory_space<vmem>>) attributes {dimension_semantics = [#tpu.dimension_semantics<parallel>, #tpu.dimension_semantics<parallel>, #tpu.dimension_semantics<arbitrary>], iteration_bounds = array<i64: 1, 1, 1>, scalar_prefetch = 0 : i64, scratch_operands = 0 : i64, tpu.core_type = #tpu.core_type<tc>, window_params = [{transform_indices = @transform_0, window_bounds = array<i64: 16, 128>}, {transform_indices = @transform_1, window_bounds = array<i64: 128, 128>}, {transform_indices = @transform_2, window_bounds = array<i64: 1, 128>}, {transform_indices = @transform_3, window_bounds = array<i64: 128, 128>}, {transform_indices = @transform_4, window_bounds = array<i64: 1, 128>}, {transform_indices = @transform_5, window_bounds = array<i64: 16, 128>}]} {
    %c0_i32 = arith.constant 0 : i32
    %0 = arith.cmpi eq, %arg2, %c0_i32 : i32
    %1 = arith.extui %0 : i1 to i32
    %c0_i32_0 = arith.constant 0 : i32
    %2 = arith.cmpi ne, %1, %c0_i32_0 : i32
    scf.if %2 {
      %c0_16 = arith.constant 0 : index
      %c0_17 = arith.constant 0 : index
      %22 = vector.load %arg7[%c0_16, %c0_17] : memref<1x128xf32, #tpu.memory_space<vmem>>, vector<1x128xf32>
      %23 = vector.shape_cast %22 : vector<1x128xf32> to vector<1x128xf32>
      %24 = vector.broadcast %23 : vector<1x128xf32> to vector<16x128xf32>
      %c0_18 = arith.constant 0 : index
      %c0_19 = arith.constant 0 : index
      %25 = vector.load %arg8[%c0_18, %c0_19] : memref<16x128xf32, #tpu.memory_space<vmem>>, vector<16x128xf32>
      tpu.vector_store %arg8[%c0_18, %c0_19], %24 {strides = array<i32>} : memref<16x128xf32, #tpu.memory_space<vmem>>, vector<16x128xf32>,
    } else {
    }
    %c0 = arith.constant 0 : index
    %c0_1 = arith.constant 0 : index
    %3 = vector.load %arg3[%c0, %c0_1] : memref<16x128xf32, #tpu.memory_space<vmem>>, vector<16x128xf32>
    %c0_2 = arith.constant 0 : index
    %c0_3 = arith.constant 0 : index
    %4 = vector.load %arg4[%c0_2, %c0_3] : memref<128x128xf32, #tpu.memory_space<vmem>>, vector<128x128xf32>
    %cst = arith.constant dense<0.000000e+00> : vector<16x128xf32>
    %5 = tpu.matmul %3, %4, %cst {dimension_numbers = #tpu.dot_dimension_numbers<[1], [0], [0], [1], [0, 0, 1, 1], [], []>} : vector<16x128xf32>, vector<128x128xf32>, vector<16x128xf32> -> vector<16x128xf32>
    %c0_4 = arith.constant 0 : index
    %c0_5 = arith.constant 0 : index
    %6 = vector.load %arg5[%c0_4, %c0_5] : memref<1x128xf32, #tpu.memory_space<vmem>>, vector<1x128xf32>
    %7 = vector.broadcast %6 : vector<1x128xf32> to vector<16x128xf32>
    %8 = arith.addf %5, %7 : vector<16x128xf32>
    %cst_6 = arith.constant 5.000000e-01 : f32
    %9 = vector.broadcast %cst_6 : f32 to vector<16x128xf32>
    %10 = arith.mulf %9, %8 : vector<16x128xf32>
    %cst_7 = arith.constant 0.707106769 : f32
    %11 = vector.broadcast %cst_7 : f32 to vector<16x128xf32>
    %12 = arith.mulf %8, %11 : vector<16x128xf32>
    %13 = math.erf %12 : vector<16x128xf32>
    %cst_8 = arith.constant 1.000000e+00 : f32
    %14 = vector.broadcast %cst_8 : f32 to vector<16x128xf32>
    %15 = arith.addf %14, %13 : vector<16x128xf32>
    %16 = arith.mulf %10, %15 : vector<16x128xf32>
    %c0_9 = arith.constant 0 : index
    %c0_10 = arith.constant 0 : index
    %17 = vector.load %arg8[%c0_9, %c0_10] : memref<16x128xf32, #tpu.memory_space<vmem>>, vector<16x128xf32>
    %c0_11 = arith.constant 0 : index
    %c0_12 = arith.constant 0 : index
    %18 = vector.load %arg6[%c0_11, %c0_12] : memref<128x128xf32, #tpu.memory_space<vmem>>, vector<128x128xf32>
    %cst_13 = arith.constant dense<0.000000e+00> : vector<16x128xf32>
    %19 = tpu.matmul %16, %18, %cst_13 {dimension_numbers = #tpu.dot_dimension_numbers<[1], [0], [0], [1], [0, 0, 1, 1], [], []>} : vector<16x128xf32>, vector<128x128xf32>, vector<16x128xf32> -> vector<16x128xf32>
    %20 = arith.addf %17, %19 : vector<16x128xf32>
    %c0_14 = arith.constant 0 : index
    %c0_15 = arith.constant 0 : index
    %21 = vector.load %arg8[%c0_14, %c0_15] : memref<16x128xf32, #tpu.memory_space<vmem>>, vector<16x128xf32>
    tpu.vector_store %arg8[%c0_14, %c0_15], %20 {strides = array<i32>} : memref<16x128xf32, #tpu.memory_space<vmem>>, vector<16x128xf32>,
    return
  }
  func.func @transform_0(%arg0: i32, %arg1: i32, %arg2: i32) -> (i32, i32) {
    %c0_i32 = arith.constant 0 : i32
    %c0_i32_0 = arith.constant 0 : i32
    return %arg0, %c0_i32 : i32, i32
  }
  func.func @transform_1(%arg0: i32, %arg1: i32, %arg2: i32) -> (i32, i32) {
    %c0_i32 = arith.constant 0 : i32
    %c0_i32_0 = arith.constant 0 : i32
    return %c0_i32, %arg2 : i32, i32
  }
  func.func @transform_2(%arg0: i32, %arg1: i32, %arg2: i32) -> (i32, i32) {
    %c0_i32 = arith.constant 0 : i32
    %c0_i32_0 = arith.constant 0 : i32
    return %c0_i32, %arg2 : i32, i32
  }
  func.func @transform_3(%arg0: i32, %arg1: i32, %arg2: i32) -> (i32, i32) {
    %c0_i32 = arith.constant 0 : i32
    return %arg2, %arg1 : i32, i32
  }
  func.func @transform_4(%arg0: i32, %arg1: i32, %arg2: i32) -> (i32, i32) {
    %c0_i32 = arith.constant 0 : i32
    %c0_i32_0 = arith.constant 0 : i32
    return %c0_i32, %arg1 : i32, i32
  }
  func.func @transform_5(%arg0: i32, %arg1: i32, %arg2: i32) -> (i32, i32) {
    %c0_i32 = arith.constant 0 : i32
    return %arg0, %arg1 : i32, i32
  }
}

</mosaic_0001>

<llo_original>
// kernel: _fwd.1
$region0: #{_fwd.1}
  #allocation0 [shape = 'u32[]', space=smem, size = 0x4, offset = 0x4, fixed_abs, tag = 'smem constant byte address 0x4 - core index']
  #allocation1 [shape = 'u32[144,128]{1,0:T(1,128)}', space=vmem, size = 0x12000, scoped, tag = 'internal scratch']
  %s0 = inlined_call_operand.vmem [shape: f32[16,128], index: 0, kind: input, shape index: {}]
  %s1 = inlined_call_operand.hbm [shape: f32[128,128], index: 1, kind: input, shape index: {}]
  %s2 = inlined_call_operand.vmem [shape: f32[1,128], index: 2, kind: input, shape index: {}]
  %s3 = inlined_call_operand.hbm [shape: f32[128,128], index: 3, kind: input, shape index: {}]
  %s4 = inlined_call_operand.vmem [shape: f32[1,128], index: 4, kind: input, shape index: {}]
  %s5 = inlined_call_operand.hbm [shape: f32[16,128], index: 5, kind: output, shape index: {}]
  %s6 = sld [smem:[#allocation0]]
  $region42: #{_fwd.1} parent=0
    _
  %s8 = ssub.s32 1, %s6
  %s9 = scalar_select 0, %s8, %s6
  $region1: #{_fwd.1} parent=0
    #allocation2 [shape = 'u8[65536]{0}', space=vmem, size = 0x10000, scoped, tag = 'input window, operand 1, single buffered']
    #allocation3 [shape = 's32[1]{0}', space=sflag, size = 0x4, scoped, tag = 'scoped memory for _fwd.1']
    #allocation4 [shape = 's32[1]{0}', space=sflag, size = 0x4, scoped, tag = 'scoped memory for _fwd.1']
    #allocation5 [shape = 'u8[65536]{0}', space=vmem, size = 0x10000, scoped, tag = 'input window, operand 3, single buffered']
    #allocation6 [shape = 's32[1]{0}', space=sflag, size = 0x4, scoped, tag = 'scoped memory for _fwd.1']
    #allocation7 [shape = 'u8[8192]{0}', space=vmem, size = 0x2000, scoped, tag = 'output window, operand 0, single buffered']
    %10 = vsyncpa [#allocation3], 0
    %11 = vsyncpa [#allocation6], 0
    %12 = vsyncpa [#allocation4], 0
    // Predicated region
    $region2: #{_fwd.1} parent=1 // pred_check
      _
    $region3: #{_fwd.1} parent=1 // pred_check_branch
      %14 = sbr.rel (0) target = $region5
    $region4: #{_fwd.1} parent=1 // pred_region
      _
    $region5: #{_fwd.1} parent=1 // pred_fallthru
      _
    // Predicated region
    $region6: #{_fwd.1} parent=1 // pred_check
      _
    $region7: #{_fwd.1} parent=1 // pred_check_branch
      %16 = sbr.rel (0) target = $region9
    $region8: #{_fwd.1} parent=1 // pred_region
      %s18 = ssub.s32 2048, 2048
      %19 = vsyncadd [#allocation3], %s18
      %s20 = sshll.u32 [#allocation2], 4
      %s21 = int_to_ptr.vmem [resolvable:$true] %s20
      %26 = dma.hbm_to_vmem [thread:$0]  %s1, 2048, %s21, [#allocation3], 128, 128, 8
    $region9: #{_fwd.1} parent=1 // pred_fallthru
      _
    // Predicated region
    $region10: #{_fwd.1} parent=1 // pred_check
      _
    $region11: #{_fwd.1} parent=1 // pred_check_branch
      %28 = sbr.rel (0) target = $region13
    $region12: #{_fwd.1} parent=1 // pred_region
      _
    $region13: #{_fwd.1} parent=1 // pred_fallthru
      _
    // Predicated region
    $region14: #{_fwd.1} parent=1 // pred_check
      _
    $region15: #{_fwd.1} parent=1 // pred_check_branch
      %30 = sbr.rel (0) target = $region17
    $region16: #{_fwd.1} parent=1 // pred_region
      %s32 = ssub.s32 2048, 2048
      %33 = vsyncadd [#allocation6], %s32
      %s34 = sshll.u32 [#allocation5], 4
      %s35 = int_to_ptr.vmem [resolvable:$true] %s34
      %40 = dma.hbm_to_vmem [thread:$0]  %s3, 2048, %s35, [#allocation6], 128, 128, 8
    $region17: #{_fwd.1} parent=1 // pred_fallthru
      _
    // Predicated region
    $region18: #{_fwd.1} parent=1 // pred_check
      _
    $region19: #{_fwd.1} parent=1 // pred_check_branch
      %42 = sbr.rel (0) target = $region21
    $region20: #{_fwd.1} parent=1 // pred_region
      _
    $region21: #{_fwd.1} parent=1 // pred_fallthru
      _
    // Predicated region
    $region22: #{_fwd.1} parent=1 // pred_check
      _
    $region23: #{_fwd.1} parent=1 // pred_check_branch
      %44 = sbr.rel (0) target = $region25
    $region24: #{_fwd.1} parent=1 // pred_region
      %45 = dma.done [#allocation3], 2048
    $region25: #{_fwd.1} parent=1 // pred_fallthru
      _
    // Predicated region
    $region26: #{_fwd.1} parent=1 // pred_check
      _
    $region27: #{_fwd.1} parent=1 // pred_check_branch
      %47 = sbr.rel (0) target = $region29
    $region28: #{_fwd.1} parent=1 // pred_region
      %48 = dma.done [#allocation6], 2048
    $region29: #{_fwd.1} parent=1 // pred_fallthru
      _
    %p49 = scmp.eq.s32.totalorder 0, 0
    // Predicated region
    $region30: #{_fwd.1} parent=1 // pred_check
      %p50 = pneg %p49
    $region31: #{_fwd.1} parent=1 // pred_check_branch
      %52 = sbr.rel (%p50) target = $region33
    $region32: #{_fwd.1} parent=1 // pred_region
      %v53 = vld [vmem:[%s4] sm:$0x1]
      %v55 = vlaneseq
      %v56 = vshrl.u32 %v55, 7
      %v57 = vsub.s32 0, %v56
      %v58 = vrot.slane %v53, %v57
      %60 = vst [vmem:[#allocation7] sm:$0xff] %v58
      %61 = vst [vmem:[#allocation7 + $0x8] sm:$0xff] %v58
    $region33: #{_fwd.1} parent=1 // pred_fallthru
      _
    %v62 = vld [vmem:[%s0] sm:$0xff]
    %v63 = vld [vmem:[%s0 + $0x8] sm:$0xff]
    %v64 = vld [vmem:[#allocation2] sm:$0xff]
    %v65 = vld [vmem:[#allocation2 + $0x8] sm:$0xff]
    %v66 = vld [vmem:[#allocation2 + $0x10] sm:$0xff]
    %v67 = vld [vmem:[#allocation2 + $0x18] sm:$0xff]
    %v68 = vld [vmem:[#allocation2 + $0x20] sm:$0xff]
    %v69 = vld [vmem:[#allocation2 + $0x28] sm:$0xff]
    %v70 = vld [vmem:[#allocation2 + $0x30] sm:$0xff]
    %v71 = vld [vmem:[#allocation2 + $0x38] sm:$0xff]
    %v72 = vld [vmem:[#allocation2 + $0x40] sm:$0xff]
    %v73 = vld [vmem:[#allocation2 + $0x48] sm:$0xff]
    %v74 = vld [vmem:[#allocation2 + $0x50] sm:$0xff]
    %v75 = vld [vmem:[#allocation2 + $0x58] sm:$0xff]
    %v76 = vld [vmem:[#allocation2 + $0x60] sm:$0xff]
    %v77 = vld [vmem:[#allocation2 + $0x68] sm:$0xff]
    %v78 = vld [vmem:[#allocation2 + $0x70] sm:$0xff]
    %v79 = vld [vmem:[#allocation2 + $0x78] sm:$0xff]
    %v80 = vld [vmem:[%s2] sm:$0x1]
    %v82 = vlaneseq
    %v83 = vshrl.u32 %v82, 7
    %v84 = vsub.s32 0, %v83
    %v85 = vrot.slane %v80, %v84
    %87 = vmatprep.subr.mxu0 0.0
    %88 = vmatpush1.msra.mxu0 %v64
    %89 = vmatprep.subr.mxu0 0.0
    %90 = vmatpush1.msra.mxu0 %v65
    %91 = vmatprep.subr.mxu0 0.0
    %92 = vmatpush1.msra.mxu0 %v66
    %93 = vmatprep.subr.mxu0 0.0
    %94 = vmatpush1.msra.mxu0 %v67
    %95 = vmatprep.subr.mxu0 0.0
    %96 = vmatpush1.msra.mxu0 %v68
    %97 = vmatprep.subr.mxu0 0.0
    %98 = vmatpush1.msra.mxu0 %v69
    %99 = vmatprep.subr.mxu0 0.0
    %100 = vmatpush1.msra.mxu0 %v70
    %101 = vmatprep.subr.mxu0 0.0
    %102 = vmatpush1.msra.mxu0 %v71
    %103 = vmatprep.subr.mxu0 0.0
    %104 = vmatpush1.msra.mxu0 %v72
    %105 = vmatprep.subr.mxu0 0.0
    %106 = vmatpush1.msra.mxu0 %v73
    %107 = vmatprep.subr.mxu0 0.0
    %108 = vmatpush1.msra.mxu0 %v74
    %109 = vmatprep.subr.mxu0 0.0
    %110 = vmatpush1.msra.mxu0 %v75
    %111 = vmatprep.subr.mxu0 0.0
    %112 = vmatpush1.msra.mxu0 %v76
    %113 = vmatprep.subr.mxu0 0.0
    %114 = vmatpush1.msra.mxu0 %v77
    %115 = vmatprep.subr.mxu0 0.0
    %116 = vmatpush1.msra.mxu0 %v78
    %117 = vmatprep.subr.mxu0 0.0
    %118 = vmatpush1.msra.mxu0 %v79
    %119 = vmatprep.subr.mxu0 0.0
    %120 = vmatpush1.msra.mxu0 0.0
    %121 = vmatprep.subr.mxu0 0.0
    %122 = vmatpush1.msra.mxu0 0.0
    %123 = vmatprep.subr.mxu0 0.0
    %124 = vmatpush1.msra.mxu0 0.0
    %125 = vmatprep.subr.mxu0 0.0
    %126 = vmatpush1.msra.mxu0 0.0
    %127 = vmatprep.subr.mxu0 0.0
    %128 = vmatpush1.msra.mxu0 0.0
    %129 = vmatprep.subr.mxu0 0.0
    %130 = vmatpush1.msra.mxu0 0.0
    %131 = vmatprep.subr.mxu0 0.0
    %132 = vmatpush1.msra.mxu0 0.0
    %133 = vmatprep.subr.mxu0 0.0
    %134 = vmatpush1.msra.mxu0 0.0
    %135 = vmatprep.subr.mxu0 0.0
    %136 = vmatpush1.msra.mxu0 0.0
    %137 = vmatprep.subr.mxu0 0.0
    %138 = vmatpush1.msra.mxu0 0.0
    %139 = vmatprep.subr.mxu0 0.0
    %140 = vmatpush1.msra.mxu0 0.0
    %141 = vmatprep.subr.mxu0 0.0
    %142 = vmatpush1.msra.mxu0 0.0
    %143 = vmatprep.subr.mxu0 0.0
    %144 = vmatpush1.msra.mxu0 0.0
    %145 = vmatprep.subr.mxu0 0.0
    %146 = vmatpush1.msra.mxu0 0.0
    %147 = vmatprep.subr.mxu0 0.0
    %148 = vmatpush1.msra.mxu0 0.0
    %149 = vmatprep.subr.mxu0 0.0
    %150 = vmatpush1.msra.mxu0 0.0
    %151 = vmatprep.mubr.f32.mxu0 0.0
    %152 = vmatmul.mubr.f32.gmra.mrb[0].mxu0 %v62
    %v153 = vpop.f32.mrb[0].mxu0
    %v154 = vadd.f32 %v85, %v153
    %v155 = vpop.f32.mrb[0].mxu0
    %156 = vmatprep.mubr.f32.mxu0 0.0
    %157 = vmatmul.mubr.f32.gmra.mrb[0].mxu0 %v63
    %v158 = vpop.f32.mrb[0].mxu0
    %v159 = vadd.f32 %v85, %v158
    %v160 = vpop.f32.mrb[0].mxu0
    %161 = vdwg.mxu0
    %v162 = vmul.f32 %v154, 0.5
    %v163 = vmul.f32 %v159, 0.5
    %v164 = vmul.f32 %v154, 0.70710677
    %v165 = vmul.f32 %v159, 0.70710677
    %v166 = verf.f32.pop %v164
    %v167 = verf.f32.pop %v165
    %v168 = vadd.f32 %v166, 1.0
    %v169 = vadd.f32 %v167, 1.0
    %v170 = vmul.f32 %v162, %v168
    %v171 = vmul.f32 %v163, %v169
    %v172 = vld [vmem:[#allocation7] sm:$0xff]
    %v173 = vld [vmem:[#allocation7 + $0x8] sm:$0xff]
    %v174 = vld [vmem:[#allocation5] sm:$0xff]
    %v175 = vld [vmem:[#allocation5 + $0x8] sm:$0xff]
    %v176 = vld [vmem:[#allocation5 + $0x10] sm:$0xff]
    %v177 = vld [vmem:[#allocation5 + $0x18] sm:$0xff]
    %v178 = vld [vmem:[#allocation5 + $0x20] sm:$0xff]
    %v179 = vld [vmem:[#allocation5 + $0x28] sm:$0xff]
    %v180 = vld [vmem:[#allocation5 + $0x30] sm:$0xff]
    %v181 = vld [vmem:[#allocation5 + $0x38] sm:$0xff]
    %v182 = vld [vmem:[#allocation5 + $0x40] sm:$0xff]
    %v183 = vld [vmem:[#allocation5 + $0x48] sm:$0xff]
    %v184 = vld [vmem:[#allocation5 + $0x50] sm:$0xff]
    %v185 = vld [vmem:[#allocation5 + $0x58] sm:$0xff]
    %v186 = vld [vmem:[#allocation5 + $0x60] sm:$0xff]
    %v187 = vld [vmem:[#allocation5 + $0x68] sm:$0xff]
    %v188 = vld [vmem:[#allocation5 + $0x70] sm:$0xff]
    %v189 = vld [vmem:[#allocation5 + $0x78] sm:$0xff]
    %190 = vmatprep.subr.mxu0 0.0
    %191 = vmatpush1.msra.mxu0 %v174
    %192 = vmatprep.subr.mxu0 0.0
    %193 = vmatpush1.msra.mxu0 %v175
    %194 = vmatprep.subr.mxu0 0.0
    %195 = vmatpush1.msra.mxu0 %v176
    %196 = vmatprep.subr.mxu0 0.0
    %197 = vmatpush1.msra.mxu0 %v177
    %198 = vmatprep.subr.mxu0 0.0
    %199 = vmatpush1.msra.mxu0 %v178
    %200 = vmatprep.subr.mxu0 0.0
    %201 = vmatpush1.msra.mxu0 %v179
    %202 = vmatprep.subr.mxu0 0.0
    %203 = vmatpush1.msra.mxu0 %v180
    %204 = vmatprep.subr.mxu0 0.0
    %205 = vmatpush1.msra.mxu0 %v181
    %206 = vmatprep.subr.mxu0 0.0
    %207 = vmatpush1.msra.mxu0 %v182
    %208 = vmatprep.subr.mxu0 0.0
    %209 = vmatpush1.msra.mxu0 %v183
    %210 = vmatprep.subr.mxu0 0.0
    %211 = vmatpush1.msra.mxu0 %v184
    %212 = vmatprep.subr.mxu0 0.0
    %213 = vmatpush1.msra.mxu0 %v185
    %214 = vmatprep.subr.mxu0 0.0
    %215 = vmatpush1.msra.mxu0 %v186
    %216 = vmatprep.subr.mxu0 0.0
    %217 = vmatpush1.msra.mxu0 %v187
    %218 = vmatprep.subr.mxu0 0.0
    %219 = vmatpush1.msra.mxu0 %v188
    %220 = vmatprep.subr.mxu0 0.0
    %221 = vmatpush1.msra.mxu0 %v189
    %222 = vmatprep.subr.mxu0 0.0
    %223 = vmatpush1.msra.mxu0 0.0
    %224 = vmatprep.subr.mxu0 0.0
    %225 = vmatpush1.msra.mxu0 0.0
    %226 = vmatprep.subr.mxu0 0.0
    %227 = vmatpush1.msra.mxu0 0.0
    %228 = vmatprep.subr.mxu0 0.0
    %229 = vmatpush1.msra.mxu0 0.0
    %230 = vmatprep.subr.mxu0 0.0
    %231 = vmatpush1.msra.mxu0 0.0
    %232 = vmatprep.subr.mxu0 0.0
    %233 = vmatpush1.msra.mxu0 0.0
    %234 = vmatprep.subr.mxu0 0.0
    %235 = vmatpush1.msra.mxu0 0.0
    %236 = vmatprep.subr.mxu0 0.0
    %237 = vmatpush1.msra.mxu0 0.0
    %238 = vmatprep.subr.mxu0 0.0
    %239 = vmatpush1.msra.mxu0 0.0
    %240 = vmatprep.subr.mxu0 0.0
    %241 = vmatpush1.msra.mxu0 0.0
    %242 = vmatprep.subr.mxu0 0.0
    %243 = vmatpush1.msra.mxu0 0.0
    %244 = vmatprep.subr.mxu0 0.0
    %245 = vmatpush1.msra.mxu0 0.0
    %246 = vmatprep.subr.mxu0 0.0
    %247 = vmatpush1.msra.mxu0 0.0
    %248 = vmatprep.subr.mxu0 0.0
    %249 = vmatpush1.msra.mxu0 0.0
    %250 = vmatprep.subr.mxu0 0.0
    %251 = vmatpush1.msra.mxu0 0.0
    %252 = vmatprep.subr.mxu0 0.0
    %253 = vmatpush1.msra.mxu0 0.0
    %254 = vmatprep.mubr.f32.mxu0 0.0
    %255 = vmatmul.mubr.f32.gmra.mrb[0].mxu0 %v170
    %v256 = vpop.f32.mrb[0].mxu0
    %v257 = vadd.f32 0.0, %v256
    %v258 = vpop.f32.mrb[0].mxu0
    %259 = vmatprep.mubr.f32.mxu0 0.0
    %260 = vmatmul.mubr.f32.gmra.mrb[0].mxu0 %v171
    %v261 = vpop.f32.mrb[0].mxu0
    %v262 = vadd.f32 0.0, %v261
    %v263 = vpop.f32.mrb[0].mxu0
    %264 = vdwg.mxu0
    %v265 = vadd.f32 %v172, %v257
    %v266 = vadd.f32 %v173, %v262
    %267 = vst [vmem:[#allocation7] sm:$0xff] %v265
    %268 = vst [vmem:[#allocation7 + $0x8] sm:$0xff] %v266
    // Predicated region
    $region34: #{_fwd.1} parent=1 // pred_check
      _
    $region35: #{_fwd.1} parent=1 // pred_check_branch
      %270 = sbr.rel (0) target = $region37
    $region36: #{_fwd.1} parent=1 // pred_region
      %s272 = ssub.s32 256, 256
      %273 = vsyncadd [#allocation4], %s272
      %s274 = sshll.u32 [#allocation7], 4
      %s275 = int_to_ptr.vmem [resolvable:$true] %s274
      %280 = dma.vmem_to_hbm [thread:$0]  %s275, 256, %s5, [#allocation4], 128, 128, 8
    $region37: #{_fwd.1} parent=1 // pred_fallthru
      _
    // Predicated region
    $region38: #{_fwd.1} parent=1 // pred_check
      _
    $region39: #{_fwd.1} parent=1 // pred_check_branch
      %282 = sbr.rel (0) target = $region41
    $region40: #{_fwd.1} parent=1 // pred_region
      %283 = dma.done [#allocation4], 256
    $region41: #{_fwd.1} parent=1 // pred_fallthru
      _
    %284 = vsyncpa [#allocation3], 1
    %285 = vsyncpa [#allocation6], 1
    %286 = vsyncpa [#allocation4], 1

</llo_original>
